<compile_context>
chip_gen: v5e
topology: v5e:2x2
jax: 0.10.0
libtpu: 0.0.40
codegen_flags: <defaults>
</compile_context>

<pallas_src>
import math

import jax
import jax.numpy as jnp
from jax import lax
from jax.experimental import pallas as pl
from jax.experimental.pallas import tpu as pltpu


def _round_up(a: int, b: int) -> int:
    return ((a + b - 1) // b) * b


def _cdiv(a: int, b: int) -> int:
    return (a + b - 1) // b


def _embedding_kernel(idx_ref, w_ref, o_ref):
    # idx_ref: (TR, G)     int32 — G token ids packed per output row (pipelined block)
    # w_ref:   (G*V, G*D)  block-diagonal replicated table, resident in VMEM (single copy)
    # o_ref:   (TR, G*D)   packed embeddings; (G*D) % 128 == 0 -> unmasked lane-dense vst
    ids = idx_ref[...]                               # (TR, G)
    tr, g = ids.shape
    gv, _ = w_ref.shape
    v = gv // g

    # Out-of-range / negative ids -> -1 so they never match any lane; such tokens
    # produce an all-zero row (PyTorch nn.Embedding would raise instead).
    safe = jnp.where((ids >= 0) & (ids < v), ids, -1)

    # Grouped one-hot over the block-diagonal row axis: row r, lane (k*V + id_k).
    lane = lax.broadcasted_iota(jnp.int32, (tr, gv), 1)
    onehot = lane == safe[:, 0:1]
    for k in range(1, g):                            # static, tiny unrolled loop (G <= 8)
        onehot = jnp.logical_or(onehot, lane == (safe[:, k:k + 1] + k * v))

    # Row gather == one_hot @ block-diag table on the MXU; exact for 0/1 selection.
    packed = jnp.dot(onehot.astype(w_ref.dtype), w_ref[...],
                     preferred_element_type=jnp.float32)
    o_ref[...] = packed.astype(o_ref.dtype)


def custom_embedding(x, weight, *, tokens_per_tile=1024, group=None,
                     out_dtype=None, min_pallas_tokens=2048, force_pallas=False):
    """x: int (B, S); weight: (V, D) float -> (B, S, D) in out_dtype (default weight.dtype)."""
    B, S = x.shape
    V, D = weight.shape
    N = B * S
    out_dtype = weight.dtype if out_dtype is None else jnp.dtype(out_dtype)

    # Tiny inputs: pallas_call launch/padding overhead dominates; plain XLA gather
    # is already at the HBM floor.
    if N < min_pallas_tokens and not force_pallas:
        return weight[x].astype(out_dtype)

    # ---- token packing: G tokens per lane-dense output row -------------------
    # Smallest G with (G*D) % 128 == 0; G=8 can be forced (e.g. to fill v6e/v7x's
    # 256-wide MXU) via the `group` argument.
    G = int(group) if group is not None else 128 // math.gcd(D, 128)
    GD, GV = G * D, G * V
    # Block-diagonal replicated table: Wb[g*V + v, g*D + d] = weight[v, d].
    w_blk = jnp.kron(jnp.eye(G, dtype=weight.dtype), weight)          # (GV, GD)

    # ---- packed-row tiling: big, balanced, even tile count (v7x megacore) ----
    rows = _cdiv(N, G)
    max_rows_per_tile = max(8, tokens_per_tile // G)
    ntiles = _cdiv(rows, max_rows_per_tile)
    if rows >= 16:
        ntiles = max(2, 2 * _cdiv(ntiles, 2))        # even split across the 2 TCs
    rows_per_tile = _round_up(_cdiv(rows, ntiles), 8)
    rows_pad = ntiles * rows_per_tile
    n_tok_pad = rows_pad * G

    idx = x.reshape(N).astype(jnp.int32)
    if n_tok_pad != N:
        idx = jnp.pad(idx, (0, n_tok_pad - N))        # pad ids -> row-0 gathers, dropped later
    idx = idx.reshape(rows_pad, G)

    out_isz = jnp.dtype(out_dtype).itemsize
    w_isz = jnp.dtype(weight.dtype).itemsize
    cost = pl.CostEstimate(
        flops=2 * rows_pad * GV * GD,
        transcendentals=0,
        bytes_accessed=n_tok_pad * 4 + GV * GD * w_isz + rows_pad * GD * out_isz,
    )

    # Right-sized VMEM budget: double-buffered idx/out blocks + resident table + slack.
    need = 2 * rows_per_tile * (G * 4 + GD * out_isz) + GV * GD * w_isz
    vmem_limit = min(64 << 20, max(4 << 20, int(1.5 * need) + (2 << 20)))

    out_packed = pl.pallas_call(
        _embedding_kernel,
        out_shape=jax.ShapeDtypeStruct((rows_pad, GD), out_dtype),
        grid_spec=pltpu.PrefetchScalarGridSpec(
            num_scalar_prefetch=0,
            grid=(ntiles,),
            in_specs=[
                # packed-index tile, pipelined across the token grid
                pl.BlockSpec((rows_per_tile, G), lambda i: (i, 0)),
                # whole block-diagonal table resident in VMEM once (no per-step DMA)
                pl.BlockSpec(memory_space=pltpu.MemorySpace.VMEM),
            ],
            out_specs=pl.BlockSpec((rows_per_tile, GD), lambda i: (i, 0)),
        ),
        compiler_params=pltpu.CompilerParams(
            dimension_semantics=("parallel",),        # shard token tiles across TCs
            vmem_limit_bytes=vmem_limit,
        ),
        cost_estimate=cost,
    )(idx, w_blk)

    out = out_packed.reshape(rows_pad * G, D)         # free row-major split, no column slice
    if n_tok_pad != N:
        out = out[:N]
    return out.reshape(B, S, D)


if __name__ == "__main__":
    # Module config: num_embeddings=32, embedding_dim=32; small example batch.
    num_embeddings, embedding_dim = 32, 32

    key = jax.random.PRNGKey(0)
    k_w, k_x1, k_x2 = jax.random.split(key, 3)

    # Deterministic parameter init matching 0.01 * randn((V, D))
    weight = 0.01 * jax.random.normal(
        k_w, (num_embeddings, embedding_dim), dtype=jnp.float32)

    # Small demo shape implied by the module (batch=2, seq=8) — force the Pallas path.
    x_small = jax.random.randint(k_x1, (2, 8), 0, num_embeddings, dtype=jnp.int32)
    out_small = jax.block_until_ready(
        custom_embedding(x_small, weight, force_pallas=True))
    ref_small = weight[x_small]
    assert out_small.shape == (2, 8, embedding_dim)
    assert jnp.allclose(out_small, ref_small, atol=1e-6), "small-shape mismatch vs reference"

    # Slightly larger check exercising the multi-tile balanced grid + token padding.
    x_big = jax.random.randint(k_x2, (4, 520), 0, num_embeddings, dtype=jnp.int32)
    out_big = jax.block_until_ready(custom_embedding(x_big, weight))
    ref_big = weight[x_big]
    assert out_big.shape == (4, 520, embedding_dim)
    assert jnp.allclose(out_big, ref_big, atol=1e-6), "large-shape mismatch vs reference"

    print("KERNEL_OK")
</pallas_src>

<mosaic_0001>
module attributes {stable_mosaic.version = 11 : i64} {
  func.func @_embedding_kernel(%arg0: i32, %arg1: memref<8x4xi32, #tpu.memory_space<vmem>>, %arg2: memref<128x128xf32, #tpu.memory_space<vmem>>, %arg3: memref<8x128xf32, #tpu.memory_space<vmem>>) attributes {dimension_semantics = [#tpu.dimension_semantics<parallel>], iteration_bounds = array<i64: 1>, scalar_prefetch = 0 : i64, scratch_operands = 0 : i64, tpu.core_type = #tpu.core_type<tc>, window_params = [{transform_indices = @transform_0, window_bounds = array<i64: 8, 4>}, {pipeline_mode = #tpu.pipeline_mode<synchronous>, transform_indices = @transform_1, window_bounds = array<i64: 128, 128>}, {transform_indices = @transform_2, window_bounds = array<i64: 8, 128>}]} {
    %c0 = arith.constant 0 : index
    %c0_0 = arith.constant 0 : index
    %0 = vector.load %arg1[%c0, %c0_0] : memref<8x4xi32, #tpu.memory_space<vmem>>, vector<8x4xi32>
    %c0_i32 = arith.constant 0 : i32
    %1 = vector.broadcast %c0_i32 : i32 to vector<8x4xi32>
    %2 = arith.cmpi sge, %0, %1 : vector<8x4xi32>
    %c32_i32 = arith.constant 32 : i32
    %3 = vector.broadcast %c32_i32 : i32 to vector<8x4xi32>
    %4 = arith.cmpi slt, %0, %3 : vector<8x4xi32>
    %5 = arith.andi %2, %4 : vector<8x4xi1>
    %c-1_i32 = arith.constant -1 : i32
    %6 = vector.broadcast %c-1_i32 : i32 to vector<8x4xi32>
    %7 = arith.select %5, %0, %6 : vector<8x4xi1>, vector<8x4xi32>
    %8 = tpu.iota {dimensions = array<i32: 1>} : vector<8x128xi32>
    %9 = vector.extract_strided_slice %7 {offsets = [0, 0], sizes = [8, 1], strides = [1, 1]} : vector<8x4xi32> to vector<8x1xi32>
    %10 = vector.broadcast %9 : vector<8x1xi32> to vector<8x128xi32>
    %11 = arith.cmpi eq, %8, %10 : vector<8x128xi32>
    %12 = vector.extract_strided_slice %7 {offsets = [0, 1], sizes = [8, 1], strides = [1, 1]} : vector<8x4xi32> to vector<8x1xi32>
    %c32_i32_1 = arith.constant 32 : i32
    %13 = vector.broadcast %c32_i32_1 : i32 to vector<8x1xi32>
    %14 = arith.addi %12, %13 : vector<8x1xi32>
    %15 = vector.broadcast %14 : vector<8x1xi32> to vector<8x128xi32>
    %16 = arith.cmpi eq, %8, %15 : vector<8x128xi32>
    %17 = arith.ori %11, %16 : vector<8x128xi1>
    %18 = vector.extract_strided_slice %7 {offsets = [0, 2], sizes = [8, 1], strides = [1, 1]} : vector<8x4xi32> to vector<8x1xi32>
    %c64_i32 = arith.constant 64 : i32
    %19 = vector.broadcast %c64_i32 : i32 to vector<8x1xi32>
    %20 = arith.addi %18, %19 : vector<8x1xi32>
    %21 = vector.broadcast %20 : vector<8x1xi32> to vector<8x128xi32>
    %22 = arith.cmpi eq, %8, %21 : vector<8x128xi32>
    %23 = arith.ori %17, %22 : vector<8x128xi1>
    %24 = vector.extract_strided_slice %7 {offsets = [0, 3], sizes = [8, 1], strides = [1, 1]} : vector<8x4xi32> to vector<8x1xi32>
    %c96_i32 = arith.constant 96 : i32
    %25 = vector.broadcast %c96_i32 : i32 to vector<8x1xi32>
    %26 = arith.addi %24, %25 : vector<8x1xi32>
    %27 = vector.broadcast %26 : vector<8x1xi32> to vector<8x128xi32>
    %28 = arith.cmpi eq, %8, %27 : vector<8x128xi32>
    %29 = arith.ori %23, %28 : vector<8x128xi1>
    %30 = arith.extui %29 : vector<8x128xi1> to vector<8x128xi32>
    %31 = arith.sitofp %30 : vector<8x128xi32> to vector<8x128xf32>
    %c0_2 = arith.constant 0 : index
    %c0_3 = arith.constant 0 : index
    %32 = vector.load %arg2[%c0_2, %c0_3] : memref<128x128xf32, #tpu.memory_space<vmem>>, vector<128x128xf32>
    %cst = arith.constant dense<0.000000e+00> : vector<8x128xf32>
    %33 = tpu.matmul %31, %32, %cst {dimension_numbers = #tpu.dot_dimension_numbers<[1], [0], [0], [1], [0, 0, 1, 1], [], []>} : vector<8x128xf32>, vector<128x128xf32>, vector<8x128xf32> -> vector<8x128xf32>
    %c0_4 = arith.constant 0 : index
    %c0_5 = arith.constant 0 : index
    %34 = vector.load %arg3[%c0_4, %c0_5] : memref<8x128xf32, #tpu.memory_space<vmem>>, vector<8x128xf32>
    tpu.vector_store %arg3[%c0_4, %c0_5], %33 {strides = array<i32>} : memref<8x128xf32, #tpu.memory_space<vmem>>, vector<8x128xf32>,
    return
  }
  func.func @transform_0(%arg0: i32) -> (i32, i32) {
    %c0_i32 = arith.constant 0 : i32
    %c0_i32_0 = arith.constant 0 : i32
    return %arg0, %c0_i32 : i32, i32
  }
  func.func @transform_1(%arg0: i32) -> (i32, i32) {
    %c0_i32 = arith.constant 0 : i32
    %c0_i32_0 = arith.constant 0 : i32
    %c0_i32_1 = arith.constant 0 : i32
    return %c0_i32, %c0_i32_0 : i32, i32
  }
  func.func @transform_2(%arg0: i32) -> (i32, i32) {
    %c0_i32 = arith.constant 0 : i32
    %c0_i32_0 = arith.constant 0 : i32
    return %arg0, %c0_i32 : i32, i32
  }
}

</mosaic_0001>

<llo_original>
// kernel: tpu_custom_call.1
$region0: #{tpu_custom_call.1}
  #allocation0 [shape = 'u32[]', space=smem, size = 0x4, offset = 0x4, fixed_abs, tag = 'smem constant byte address 0x4 - core index']
  #allocation1 [shape = 'u32[72,128]{1,0:T(1,128)}', space=vmem, size = 0x9000, scoped, tag = 'internal scratch']
  %s0 = inlined_call_operand.vmem [shape: s32[8,4], index: 0, kind: input, shape index: {}]
  %s1 = inlined_call_operand.hbm [shape: f32[128,128], index: 1, kind: input, shape index: {}]
  %s2 = inlined_call_operand.hbm [shape: f32[8,128], index: 2, kind: output, shape index: {}]
  %s3 = sld [smem:[#allocation0]]
  $region22: #{tpu_custom_call.1} parent=0
    _
  %s5 = ssub.s32 1, %s3
  %s6 = scalar_select 0, %s5, %s3
  $region1: #{tpu_custom_call.1} parent=0
    #allocation2 [shape = 'u8[65536]{0}', space=vmem, size = 0x10000, scoped, tag = 'input window, operand 1, single buffered']
    #allocation3 [shape = 's32[1]{0}', space=sflag, size = 0x4, scoped, tag = 'scoped memory for tpu_custom_call.1']
    #allocation4 [shape = 's32[1]{0}', space=sflag, size = 0x4, scoped, tag = 'scoped memory for tpu_custom_call.1']
    #allocation5 [shape = 'u8[4096]{0}', space=vmem, size = 0x1000, scoped, tag = 'output window, operand 0, single buffered']
    %7 = vsyncpa [#allocation3], 0
    %8 = vsyncpa [#allocation4], 0
    // Predicated region
    $region2: #{tpu_custom_call.1} parent=1 // pred_check
      _
    $region3: #{tpu_custom_call.1} parent=1 // pred_check_branch
      %10 = sbr.rel (0) target = $region5
    $region4: #{tpu_custom_call.1} parent=1 // pred_region
      _
    $region5: #{tpu_custom_call.1} parent=1 // pred_fallthru
      _
    // Predicated region
    $region6: #{tpu_custom_call.1} parent=1 // pred_check
      _
    $region7: #{tpu_custom_call.1} parent=1 // pred_check_branch
      %12 = sbr.rel (0) target = $region9
    $region8: #{tpu_custom_call.1} parent=1 // pred_region
      %14 = vsyncadd [#allocation3], 0
      %s15 = sshll.u32 %s1, 4
      %s16 = int_to_ptr.hbm [resolvable:$true] %s15
      %s17 = sshll.u32 [#allocation2], 4
      %s18 = int_to_ptr.vmem [resolvable:$true] %s17
      %23 = dma.hbm_to_vmem [thread:$0]  %s16, 2048, %s18, [#allocation3], 128, 128, 8
    $region9: #{tpu_custom_call.1} parent=1 // pred_fallthru
      _
    // Predicated region
    $region10: #{tpu_custom_call.1} parent=1 // pred_check
      _
    $region11: #{tpu_custom_call.1} parent=1 // pred_check_branch
      %25 = sbr.rel (0) target = $region13
    $region12: #{tpu_custom_call.1} parent=1 // pred_region
      %27 = dma.done [#allocation3], 2048
    $region13: #{tpu_custom_call.1} parent=1 // pred_fallthru
      _
    %v28 = vld [vmem:[%s0] sm:$0xff]
    %vm29 = vcmp.ge.s32.totalorder %v28, 0
    %vm30 = vcmp.lt.s32.totalorder %v28, 32
    %vm31 = vmand %vm29, %vm30
    %v32 = vsel %vm31, %v28, 4294967295
    %v33 = vlaneseq
    %v34 = vand.u32 %v33, 127
    %35 = vset.pattern.permute.xlu0 0
    %36 = vperm.xlu0 %35, %v32
    %v37 = vpop.permute.xlu0 %36
    %vm38 = vcmp.eq.s32.totalorder %v34, %v37
    %v39 = vadd.s32 %v32, 32
    %40 = vset.pattern.permute.xlu0 1
    %41 = vperm.xlu0 %40, %v39
    %v42 = vpop.permute.xlu0 %41
    %vm43 = vcmp.eq.s32.totalorder %v34, %v42
    %vm44 = vmor %vm38, %vm43
    %v45 = vadd.s32 %v32, 64
    %46 = vset.pattern.permute.xlu0 2
    %47 = vperm.xlu0 %46, %v45
    %v48 = vpop.permute.xlu0 %47
    %vm49 = vcmp.eq.s32.totalorder %v34, %v48
    %vm50 = vmor %vm44, %vm49
    %v51 = vadd.s32 %v32, 96
    %52 = vset.pattern.permute.xlu0 3
    %53 = vperm.xlu0 %52, %v51
    %v54 = vpop.permute.xlu0 %53
    %vm55 = vcmp.eq.s32.totalorder %v34, %v54
    %vm56 = vmor %vm50, %vm55
    %v57 = vsel %vm56, 1, 0
    %v58 = vcvt.s32.f32 %v57
    %v59 = vld [vmem:[#allocation2] sm:$0xff]
    %v60 = vld [vmem:[#allocation2 + $0x8] sm:$0xff]
    %v61 = vld [vmem:[#allocation2 + $0x10] sm:$0xff]
    %v62 = vld [vmem:[#allocation2 + $0x18] sm:$0xff]
    %v63 = vld [vmem:[#allocation2 + $0x20] sm:$0xff]
    %v64 = vld [vmem:[#allocation2 + $0x28] sm:$0xff]
    %v65 = vld [vmem:[#allocation2 + $0x30] sm:$0xff]
    %v66 = vld [vmem:[#allocation2 + $0x38] sm:$0xff]
    %v67 = vld [vmem:[#allocation2 + $0x40] sm:$0xff]
    %v68 = vld [vmem:[#allocation2 + $0x48] sm:$0xff]
    %v69 = vld [vmem:[#allocation2 + $0x50] sm:$0xff]
    %v70 = vld [vmem:[#allocation2 + $0x58] sm:$0xff]
    %v71 = vld [vmem:[#allocation2 + $0x60] sm:$0xff]
    %v72 = vld [vmem:[#allocation2 + $0x68] sm:$0xff]
    %v73 = vld [vmem:[#allocation2 + $0x70] sm:$0xff]
    %v74 = vld [vmem:[#allocation2 + $0x78] sm:$0xff]
    %75 = vmatpush.msra.mxu0 %v74
    %76 = vmatpush.msra.mxu0 %v73
    %77 = vmatpush.msra.mxu0 %v72
    %78 = vmatpush.msra.mxu0 %v71
    %79 = vmatpush.msra.mxu0 %v70
    %80 = vmatpush.msra.mxu0 %v69
    %81 = vmatpush.msra.mxu0 %v68
    %82 = vmatpush.msra.mxu0 %v67
    %83 = vmatpush.msra.mxu0 %v66
    %84 = vmatpush.msra.mxu0 %v65
    %85 = vmatpush.msra.mxu0 %v64
    %86 = vmatpush.msra.mxu0 %v63
    %87 = vmatpush.msra.mxu0 %v62
    %88 = vmatpush.msra.mxu0 %v61
    %89 = vmatpush.msra.mxu0 %v60
    %90 = vmatpush.msra.mxu0 %v59
    %91 = vmatmul.f32.gmra.mxu0 %v58
    %v92 = vpop.f32.mrf.mxu0
    %v93 = vadd.f32 0.0, %v92
    %94 = vdwg.mxu0
    %95 = vst [vmem:[#allocation5] sm:$0xff] %v93
    // Predicated region
    $region14: #{tpu_custom_call.1} parent=1 // pred_check
      _
    $region15: #{tpu_custom_call.1} parent=1 // pred_check_branch
      %97 = sbr.rel (0) target = $region17
    $region16: #{tpu_custom_call.1} parent=1 // pred_region
      %99 = vsyncadd [#allocation4], 0
      %s101 = sshll.u32 [#allocation5], 4
      %s102 = int_to_ptr.vmem [resolvable:$true] %s101
      %s103 = sshll.u32 %s2, 4
      %s104 = int_to_ptr.hbm [resolvable:$true] %s103
      %106 = dma.vmem_to_hbm [thread:$0]  %s102, 128, %s104, [#allocation4]
    $region17: #{tpu_custom_call.1} parent=1 // pred_fallthru
      _
    // Predicated region
    $region18: #{tpu_custom_call.1} parent=1 // pred_check
      _
    $region19: #{tpu_custom_call.1} parent=1 // pred_check_branch
      %108 = sbr.rel (0) target = $region21
    $region20: #{tpu_custom_call.1} parent=1 // pred_region
      %110 = dma.done [#allocation4], 128
    $region21: #{tpu_custom_call.1} parent=1 // pred_fallthru
      _
    %111 = vsyncpa [#allocation3], 1
    %112 = vsyncpa [#allocation4], 1

</llo_original>
